<compile_context>
chip_gen: v5e
topology: v5e:2x2
jax: 0.10.0
libtpu: 0.0.40
codegen_flags: <defaults>
</compile_context>

<pallas_src>
import functools
import math

import numpy as np
import jax
import jax.numpy as jnp
from jax.experimental import pallas as pl
from jax.experimental.pallas import tpu as pltpu


def rc_kernel(x_ref, w_ref, b_ref, m_ref, o_ref, *, k, pad, img_w, activated, use_mxu):
    # x_ref: (1, Cin, HW)        f32   one batch element, spatial flattened on lanes
    # w_ref: (k*k*Cout, Cin)     f32   rows ordered (tap, out_channel)
    # b_ref: (Cout, 1)           f32
    # m_ref: (4, HW)             f32   border masks: [i==0, i==H-1, j==0, j==W-1]
    # o_ref: (1, Cout, HW)       f32
    cin = x_ref.shape[1]
    cout = o_ref.shape[1]
    hw = o_ref.shape[2]

    x = x_ref[0]                                     # (Cin, HW)
    w = w_ref[...]                                   # (k*k*Cout, Cin)

    # Channel mix first (linearity): z[(t,o), :] = sum_c w[t,o,c] * x[c, :].
    if use_mxu:
        z = jnp.dot(w, x, preferred_element_type=jnp.float32)
    else:
        # Cin is tiny -> broadcast-FMAs on the VPU, exact f32, no MXU warm-up bubble.
        z = w[:, 0:1] * x[0:1, :]
        for c in range(1, cin):
            z = z + w[:, c:c + 1] * x[c:c + 1, :]
    # z: (k*k*Cout, HW) f32

    m = m_ref[...]
    top = m[0:1, :] > 0.5
    bot = m[1:2, :] > 0.5
    left = m[2:3, :] > 0.5
    right = m[3:4, :] > 0.5

    acc = jnp.zeros((cout, hw), dtype=jnp.float32)
    for di in range(k):
        for dj in range(k):
            t = di * k + dj
            v = z[t * cout:(t + 1) * cout, :]        # (Cout, HW): 8-row aligned f32 slice
            si, sj = di - pad, dj - pad
            # Column shift with reflection: interior lane p samples p+sj, the reflecting
            # border column samples p-sj.  Lane wrap-around only hits border lanes, which
            # the select overwrites.
            if sj != 0:
                fwd = pltpu.roll(v, (-sj) % hw, axis=1)      # lane p <- p + sj
                rfl = pltpu.roll(v, sj % hw, axis=1)         # lane p <- p - sj (reflected)
                v = jnp.where(right if sj > 0 else left, rfl, fwd)
            # Row shift with reflection (shift by +-W on the flattened lane axis).
            if si != 0:
                s = si * img_w
                fwd = pltpu.roll(v, (-s) % hw, axis=1)       # lane p <- p + si*W
                rfl = pltpu.roll(v, s % hw, axis=1)          # lane p <- p - si*W (reflected)
                v = jnp.where(bot if si > 0 else top, rfl, fwd)
            acc = acc + v

    y = acc + b_ref[...]                             # bias broadcast along lanes
    if activated:
        y = jnp.maximum(y, 0.0)                      # ReLU
    o_ref[0] = y.astype(o_ref.dtype)


@functools.lru_cache(maxsize=None)
def _border_masks(h, w):
    idx = np.arange(h * w)
    i, j = idx // w, idx % w
    return np.stack([i == 0, i == h - 1, j == 0, j == w - 1]).astype(np.float32)  # (4, HW)


@functools.partial(jax.jit, static_argnames=("kernel_size", "pad_size", "activated"))
def rc_forward(x, conv_w, conv_b, *, kernel_size=3, pad_size=1, activated=True):
    """x: (N, Cin, H, W) f32; conv_w: (Cout, Cin, k, k); conv_b: (Cout,).
    Returns (N, Cout, H, W) f32 matching ReflectionPad2d(pad) -> Conv2d(k) -> ReLU."""
    N, Cin, H, W = x.shape
    Cout = conv_w.shape[0]
    k, pad = kernel_size, pad_size
    taps = k * k
    if k != 2 * pad + 1 or pad > 1:
        raise NotImplementedError(
            "roll-based RC kernel supports kernel_size == 2*pad_size + 1 with pad_size <= 1")
    HW = H * W

    x3 = x.reshape(N, Cin, HW).astype(jnp.float32)
    # Row index = (di*k + dj)*Cout + o, matching the kernel's tap slicing.
    wstack = jnp.transpose(conv_w.astype(jnp.float32), (2, 3, 0, 1)).reshape(taps * Cout, Cin)
    bcol = conv_b.astype(jnp.float32).reshape(Cout, 1)
    masks = jnp.asarray(_border_masks(H, W))          # (4, HW) f32, baked constant under jit

    kern = functools.partial(rc_kernel, k=k, pad=pad, img_w=W,
                             activated=activated, use_mxu=Cin > 8)

    out = pl.pallas_call(
        kern,
        out_shape=jax.ShapeDtypeStruct((N, Cout, HW), jnp.float32),
        grid=(N,),
        in_specs=[
            pl.BlockSpec((1, Cin, HW), lambda n: (n, 0, 0)),        # x: one batch element
            pl.BlockSpec((taps * Cout, Cin), lambda n: (0, 0)),     # stacked conv weights
            pl.BlockSpec((Cout, 1), lambda n: (0, 0)),              # bias column
            pl.BlockSpec((4, HW), lambda n: (0, 0)),                # border masks
        ],
        out_specs=pl.BlockSpec((1, Cout, HW), lambda n: (n, 0, 0)),
        compiler_params=pltpu.CompilerParams(dimension_semantics=("parallel",)),
    )(x3, wstack, bcol, masks)

    return out.reshape(N, Cout, H, W)


def rc_reference(x, conv_w, conv_b, *, pad_size=1, activated=True):
    """Pure-JAX reference with identical semantics."""
    xp = jnp.pad(x, ((0, 0), (0, 0), (pad_size, pad_size), (pad_size, pad_size)),
                 mode="reflect")
    y = jax.lax.conv_general_dilated(
        xp, conv_w, window_strides=(1, 1), padding="VALID",
        dimension_numbers=("NCHW", "OIHW", "NCHW"),
        precision=jax.lax.Precision.HIGHEST)
    y = y + conv_b.reshape(1, -1, 1, 1)
    return jnp.maximum(y, 0.0) if activated else y


if __name__ == "__main__":
    N, Cin, Cout, H, W = 2, 4, 8, 16, 16
    k, pad = 3, 1

    key = jax.random.PRNGKey(0)
    kx, kw, kb = jax.random.split(key, 3)
    x = jax.random.normal(kx, (N, Cin, H, W), dtype=jnp.float32)
    bound = 1.0 / math.sqrt(Cin * k * k)             # PyTorch Conv2d default init scale
    conv_w = jax.random.uniform(kw, (Cout, Cin, k, k), dtype=jnp.float32,
                                minval=-bound, maxval=bound)
    conv_b = jax.random.uniform(kb, (Cout,), dtype=jnp.float32,
                                minval=-bound, maxval=bound)

    out = rc_forward(x, conv_w, conv_b, kernel_size=k, pad_size=pad, activated=True)
    out = jax.block_until_ready(out)

    ref = jax.block_until_ready(rc_reference(x, conv_w, conv_b, pad_size=pad, activated=True))
    np.testing.assert_allclose(np.asarray(out), np.asarray(ref), rtol=1e-3, atol=1e-3)
    assert out.shape == (N, Cout, H, W)

    print("KERNEL_OK")
</pallas_src>

<mosaic_0001>
module attributes {stable_mosaic.version = 11 : i64} {
  func.func @rc_kernel(%arg0: i32, %arg1: memref<1x4x256xf32, #tpu.memory_space<vmem>>, %arg2: memref<72x4xf32, #tpu.memory_space<vmem>>, %arg3: memref<8x1xf32, #tpu.memory_space<vmem>>, %arg4: memref<4x256xf32, #tpu.memory_space<vmem>>, %arg5: memref<1x8x256xf32, #tpu.memory_space<vmem>>) attributes {dimension_semantics = [#tpu.dimension_semantics<parallel>], iteration_bounds = array<i64: 2>, scalar_prefetch = 0 : i64, scratch_operands = 0 : i64, tpu.core_type = #tpu.core_type<tc>, window_params = [{transform_indices = @transform_0, window_bounds = array<i64: 1, 4, 256>}, {pipeline_mode = #tpu.pipeline_mode<synchronous>, transform_indices = @transform_1, window_bounds = array<i64: 72, 4>}, {pipeline_mode = #tpu.pipeline_mode<synchronous>, transform_indices = @transform_2, window_bounds = array<i64: 8, 1>}, {pipeline_mode = #tpu.pipeline_mode<synchronous>, transform_indices = @transform_3, window_bounds = array<i64: 4, 256>}, {transform_indices = @transform_4, window_bounds = array<i64: 1, 8, 256>}]} {
    %c0 = arith.constant 0 : index
    %c0_0 = arith.constant 0 : index
    %c0_1 = arith.constant 0 : index
    %0 = vector.load %arg1[%c0, %c0_0, %c0_1] : memref<1x4x256xf32, #tpu.memory_space<vmem>>, vector<1x4x256xf32>
    %1 = vector.shape_cast %0 : vector<1x4x256xf32> to vector<4x256xf32>
    %c0_2 = arith.constant 0 : index
    %c0_3 = arith.constant 0 : index
    %2 = vector.load %arg2[%c0_2, %c0_3] : memref<72x4xf32, #tpu.memory_space<vmem>>, vector<72x4xf32>
    %3 = vector.extract_strided_slice %2 {offsets = [0, 0], sizes = [72, 1], strides = [1, 1]} : vector<72x4xf32> to vector<72x1xf32>
    %4 = vector.extract_strided_slice %1 {offsets = [0, 0], sizes = [1, 256], strides = [1, 1]} : vector<4x256xf32> to vector<1x256xf32>
    %5 = vector.broadcast %3 : vector<72x1xf32> to vector<72x256xf32>
    %6 = vector.broadcast %4 : vector<1x256xf32> to vector<72x256xf32>
    %7 = arith.mulf %5, %6 : vector<72x256xf32>
    %8 = vector.extract_strided_slice %2 {offsets = [0, 1], sizes = [72, 1], strides = [1, 1]} : vector<72x4xf32> to vector<72x1xf32>
    %9 = vector.extract_strided_slice %1 {offsets = [1, 0], sizes = [1, 256], strides = [1, 1]} : vector<4x256xf32> to vector<1x256xf32>
    %10 = vector.broadcast %8 : vector<72x1xf32> to vector<72x256xf32>
    %11 = vector.broadcast %9 : vector<1x256xf32> to vector<72x256xf32>
    %12 = arith.mulf %10, %11 : vector<72x256xf32>
    %13 = arith.addf %7, %12 : vector<72x256xf32>
    %14 = vector.extract_strided_slice %2 {offsets = [0, 2], sizes = [72, 1], strides = [1, 1]} : vector<72x4xf32> to vector<72x1xf32>
    %15 = vector.extract_strided_slice %1 {offsets = [2, 0], sizes = [1, 256], strides = [1, 1]} : vector<4x256xf32> to vector<1x256xf32>
    %16 = vector.broadcast %14 : vector<72x1xf32> to vector<72x256xf32>
    %17 = vector.broadcast %15 : vector<1x256xf32> to vector<72x256xf32>
    %18 = arith.mulf %16, %17 : vector<72x256xf32>
    %19 = arith.addf %13, %18 : vector<72x256xf32>
    %20 = vector.extract_strided_slice %2 {offsets = [0, 3], sizes = [72, 1], strides = [1, 1]} : vector<72x4xf32> to vector<72x1xf32>
    %21 = vector.extract_strided_slice %1 {offsets = [3, 0], sizes = [1, 256], strides = [1, 1]} : vector<4x256xf32> to vector<1x256xf32>
    %22 = vector.broadcast %20 : vector<72x1xf32> to vector<72x256xf32>
    %23 = vector.broadcast %21 : vector<1x256xf32> to vector<72x256xf32>
    %24 = arith.mulf %22, %23 : vector<72x256xf32>
    %25 = arith.addf %19, %24 : vector<72x256xf32>
    %c0_4 = arith.constant 0 : index
    %c0_5 = arith.constant 0 : index
    %26 = vector.load %arg4[%c0_4, %c0_5] : memref<4x256xf32, #tpu.memory_space<vmem>>, vector<4x256xf32>
    %27 = vector.extract_strided_slice %26 {offsets = [0, 0], sizes = [1, 256], strides = [1, 1]} : vector<4x256xf32> to vector<1x256xf32>
    %cst = arith.constant 5.000000e-01 : f32
    %28 = vector.broadcast %cst : f32 to vector<1x256xf32>
    %29 = arith.cmpf ogt, %27, %28 : vector<1x256xf32>
    %30 = vector.extract_strided_slice %26 {offsets = [1, 0], sizes = [1, 256], strides = [1, 1]} : vector<4x256xf32> to vector<1x256xf32>
    %cst_6 = arith.constant 5.000000e-01 : f32
    %31 = vector.broadcast %cst_6 : f32 to vector<1x256xf32>
    %32 = arith.cmpf ogt, %30, %31 : vector<1x256xf32>
    %33 = vector.extract_strided_slice %26 {offsets = [2, 0], sizes = [1, 256], strides = [1, 1]} : vector<4x256xf32> to vector<1x256xf32>
    %cst_7 = arith.constant 5.000000e-01 : f32
    %34 = vector.broadcast %cst_7 : f32 to vector<1x256xf32>
    %35 = arith.cmpf ogt, %33, %34 : vector<1x256xf32>
    %36 = vector.extract_strided_slice %26 {offsets = [3, 0], sizes = [1, 256], strides = [1, 1]} : vector<4x256xf32> to vector<1x256xf32>
    %cst_8 = arith.constant 5.000000e-01 : f32
    %37 = vector.broadcast %cst_8 : f32 to vector<1x256xf32>
    %38 = arith.cmpf ogt, %36, %37 : vector<1x256xf32>
    %cst_9 = arith.constant 0.000000e+00 : f32
    %39 = vector.broadcast %cst_9 : f32 to vector<8x256xf32>
    %40 = vector.extract_strided_slice %25 {offsets = [0, 0], sizes = [8, 256], strides = [1, 1]} : vector<72x256xf32> to vector<8x256xf32>
    %c1_i32 = arith.constant 1 : i32
    %41 = tpu.dynamic_rotate %40 by %c1_i32 dim 1 : vector<8x256xf32>, i32 -> vector<8x256xf32>
    %c255_i32 = arith.constant 255 : i32
    %42 = tpu.dynamic_rotate %40 by %c255_i32 dim 1 : vector<8x256xf32>, i32 -> vector<8x256xf32>
    %43 = vector.shape_cast %35 : vector<1x256xi1> to vector<1x256xi1>
    %44 = vector.broadcast %43 : vector<1x256xi1> to vector<8x256xi1>
    %45 = arith.select %44, %42, %41 : vector<8x256xi1>, vector<8x256xf32>
    %c16_i32 = arith.constant 16 : i32
    %46 = tpu.dynamic_rotate %45 by %c16_i32 dim 1 : vector<8x256xf32>, i32 -> vector<8x256xf32>
    %c240_i32 = arith.constant 240 : i32
    %47 = tpu.dynamic_rotate %45 by %c240_i32 dim 1 : vector<8x256xf32>, i32 -> vector<8x256xf32>
    %48 = vector.shape_cast %29 : vector<1x256xi1> to vector<1x256xi1>
    %49 = vector.broadcast %48 : vector<1x256xi1> to vector<8x256xi1>
    %50 = arith.select %49, %47, %46 : vector<8x256xi1>, vector<8x256xf32>
    %51 = arith.addf %39, %50 : vector<8x256xf32>
    %52 = vector.extract_strided_slice %25 {offsets = [8, 0], sizes = [8, 256], strides = [1, 1]} : vector<72x256xf32> to vector<8x256xf32>
    %c16_i32_10 = arith.constant 16 : i32
    %53 = tpu.dynamic_rotate %52 by %c16_i32_10 dim 1 : vector<8x256xf32>, i32 -> vector<8x256xf32>
    %c240_i32_11 = arith.constant 240 : i32
    %54 = tpu.dynamic_rotate %52 by %c240_i32_11 dim 1 : vector<8x256xf32>, i32 -> vector<8x256xf32>
    %55 = vector.shape_cast %29 : vector<1x256xi1> to vector<1x256xi1>
    %56 = vector.broadcast %55 : vector<1x256xi1> to vector<8x256xi1>
    %57 = arith.select %56, %54, %53 : vector<8x256xi1>, vector<8x256xf32>
    %58 = arith.addf %51, %57 : vector<8x256xf32>
    %59 = vector.extract_strided_slice %25 {offsets = [16, 0], sizes = [8, 256], strides = [1, 1]} : vector<72x256xf32> to vector<8x256xf32>
    %c255_i32_12 = arith.constant 255 : i32
    %60 = tpu.dynamic_rotate %59 by %c255_i32_12 dim 1 : vector<8x256xf32>, i32 -> vector<8x256xf32>
    %c1_i32_13 = arith.constant 1 : i32
    %61 = tpu.dynamic_rotate %59 by %c1_i32_13 dim 1 : vector<8x256xf32>, i32 -> vector<8x256xf32>
    %62 = vector.shape_cast %38 : vector<1x256xi1> to vector<1x256xi1>
    %63 = vector.broadcast %62 : vector<1x256xi1> to vector<8x256xi1>
    %64 = arith.select %63, %61, %60 : vector<8x256xi1>, vector<8x256xf32>
    %c16_i32_14 = arith.constant 16 : i32
    %65 = tpu.dynamic_rotate %64 by %c16_i32_14 dim 1 : vector<8x256xf32>, i32 -> vector<8x256xf32>
    %c240_i32_15 = arith.constant 240 : i32
    %66 = tpu.dynamic_rotate %64 by %c240_i32_15 dim 1 : vector<8x256xf32>, i32 -> vector<8x256xf32>
    %67 = vector.shape_cast %29 : vector<1x256xi1> to vector<1x256xi1>
    %68 = vector.broadcast %67 : vector<1x256xi1> to vector<8x256xi1>
    %69 = arith.select %68, %66, %65 : vector<8x256xi1>, vector<8x256xf32>
    %70 = arith.addf %58, %69 : vector<8x256xf32>
    %71 = vector.extract_strided_slice %25 {offsets = [24, 0], sizes = [8, 256], strides = [1, 1]} : vector<72x256xf32> to vector<8x256xf32>
    %c1_i32_16 = arith.constant 1 : i32
    %72 = tpu.dynamic_rotate %71 by %c1_i32_16 dim 1 : vector<8x256xf32>, i32 -> vector<8x256xf32>
    %c255_i32_17 = arith.constant 255 : i32
    %73 = tpu.dynamic_rotate %71 by %c255_i32_17 dim 1 : vector<8x256xf32>, i32 -> vector<8x256xf32>
    %74 = vector.shape_cast %35 : vector<1x256xi1> to vector<1x256xi1>
    %75 = vector.broadcast %74 : vector<1x256xi1> to vector<8x256xi1>
    %76 = arith.select %75, %73, %72 : vector<8x256xi1>, vector<8x256xf32>
    %77 = arith.addf %70, %76 : vector<8x256xf32>
    %78 = vector.extract_strided_slice %25 {offsets = [32, 0], sizes = [8, 256], strides = [1, 1]} : vector<72x256xf32> to vector<8x256xf32>
    %79 = arith.addf %77, %78 : vector<8x256xf32>
    %80 = vector.extract_strided_slice %25 {offsets = [40, 0], sizes = [8, 256], strides = [1, 1]} : vector<72x256xf32> to vector<8x256xf32>
    %c255_i32_18 = arith.constant 255 : i32
    %81 = tpu.dynamic_rotate %80 by %c255_i32_18 dim 1 : vector<8x256xf32>, i32 -> vector<8x256xf32>
    %c1_i32_19 = arith.constant 1 : i32
    %82 = tpu.dynamic_rotate %80 by %c1_i32_19 dim 1 : vector<8x256xf32>, i32 -> vector<8x256xf32>
    %83 = vector.shape_cast %38 : vector<1x256xi1> to vector<1x256xi1>
    %84 = vector.broadcast %83 : vector<1x256xi1> to vector<8x256xi1>
    %85 = arith.select %84, %82, %81 : vector<8x256xi1>, vector<8x256xf32>
    %86 = arith.addf %79, %85 : vector<8x256xf32>
    %87 = vector.extract_strided_slice %25 {offsets = [48, 0], sizes = [8, 256], strides = [1, 1]} : vector<72x256xf32> to vector<8x256xf32>
    %c1_i32_20 = arith.constant 1 : i32
    %88 = tpu.dynamic_rotate %87 by %c1_i32_20 dim 1 : vector<8x256xf32>, i32 -> vector<8x256xf32>
    %c255_i32_21 = arith.constant 255 : i32
    %89 = tpu.dynamic_rotate %87 by %c255_i32_21 dim 1 : vector<8x256xf32>, i32 -> vector<8x256xf32>
    %90 = vector.shape_cast %35 : vector<1x256xi1> to vector<1x256xi1>
    %91 = vector.broadcast %90 : vector<1x256xi1> to vector<8x256xi1>
    %92 = arith.select %91, %89, %88 : vector<8x256xi1>, vector<8x256xf32>
    %c240_i32_22 = arith.constant 240 : i32
    %93 = tpu.dynamic_rotate %92 by %c240_i32_22 dim 1 : vector<8x256xf32>, i32 -> vector<8x256xf32>
    %c16_i32_23 = arith.constant 16 : i32
    %94 = tpu.dynamic_rotate %92 by %c16_i32_23 dim 1 : vector<8x256xf32>, i32 -> vector<8x256xf32>
    %95 = vector.shape_cast %32 : vector<1x256xi1> to vector<1x256xi1>
    %96 = vector.broadcast %95 : vector<1x256xi1> to vector<8x256xi1>
    %97 = arith.select %96, %94, %93 : vector<8x256xi1>, vector<8x256xf32>
    %98 = arith.addf %86, %97 : vector<8x256xf32>
    %99 = vector.extract_strided_slice %25 {offsets = [56, 0], sizes = [8, 256], strides = [1, 1]} : vector<72x256xf32> to vector<8x256xf32>
    %c240_i32_24 = arith.constant 240 : i32
    %100 = tpu.dynamic_rotate %99 by %c240_i32_24 dim 1 : vector<8x256xf32>, i32 -> vector<8x256xf32>
    %c16_i32_25 = arith.constant 16 : i32
    %101 = tpu.dynamic_rotate %99 by %c16_i32_25 dim 1 : vector<8x256xf32>, i32 -> vector<8x256xf32>
    %102 = vector.shape_cast %32 : vector<1x256xi1> to vector<1x256xi1>
    %103 = vector.broadcast %102 : vector<1x256xi1> to vector<8x256xi1>
    %104 = arith.select %103, %101, %100 : vector<8x256xi1>, vector<8x256xf32>
    %105 = arith.addf %98, %104 : vector<8x256xf32>
    %106 = vector.extract_strided_slice %25 {offsets = [64, 0], sizes = [8, 256], strides = [1, 1]} : vector<72x256xf32> to vector<8x256xf32>
    %c255_i32_26 = arith.constant 255 : i32
    %107 = tpu.dynamic_rotate %106 by %c255_i32_26 dim 1 : vector<8x256xf32>, i32 -> vector<8x256xf32>
    %c1_i32_27 = arith.constant 1 : i32
    %108 = tpu.dynamic_rotate %106 by %c1_i32_27 dim 1 : vector<8x256xf32>, i32 -> vector<8x256xf32>
    %109 = vector.shape_cast %38 : vector<1x256xi1> to vector<1x256xi1>
    %110 = vector.broadcast %109 : vector<1x256xi1> to vector<8x256xi1>
    %111 = arith.select %110, %108, %107 : vector<8x256xi1>, vector<8x256xf32>
    %c240_i32_28 = arith.constant 240 : i32
    %112 = tpu.dynamic_rotate %111 by %c240_i32_28 dim 1 : vector<8x256xf32>, i32 -> vector<8x256xf32>
    %c16_i32_29 = arith.constant 16 : i32
    %113 = tpu.dynamic_rotate %111 by %c16_i32_29 dim 1 : vector<8x256xf32>, i32 -> vector<8x256xf32>
    %114 = vector.shape_cast %32 : vector<1x256xi1> to vector<1x256xi1>
    %115 = vector.broadcast %114 : vector<1x256xi1> to vector<8x256xi1>
    %116 = arith.select %115, %113, %112 : vector<8x256xi1>, vector<8x256xf32>
    %117 = arith.addf %105, %116 : vector<8x256xf32>
    %c0_30 = arith.constant 0 : index
    %c0_31 = arith.constant 0 : index
    %118 = vector.load %arg3[%c0_30, %c0_31] : memref<8x1xf32, #tpu.memory_space<vmem>>, vector<8x1xf32>
    %119 = vector.broadcast %118 : vector<8x1xf32> to vector<8x256xf32>
    %120 = arith.addf %117, %119 : vector<8x256xf32>
    %cst_32 = arith.constant 0.000000e+00 : f32
    %121 = vector.broadcast %cst_32 : f32 to vector<8x256xf32>
    %122 = arith.maximumf %120, %121 : vector<8x256xf32>
    %c0_33 = arith.constant 0 : index
    %c0_34 = arith.constant 0 : index
    %c0_35 = arith.constant 0 : index
    %123 = vector.load %arg5[%c0_33, %c0_34, %c0_35] : memref<1x8x256xf32, #tpu.memory_space<vmem>>, vector<1x8x256xf32>
    %124 = vector.shape_cast %123 : vector<1x8x256xf32> to vector<8x256xf32>
    %125 = vector.shape_cast %122 : vector<8x256xf32> to vector<1x8x256xf32>
    tpu.vector_store %arg5[%c0_33, %c0_34, %c0_35], %125 {strides = array<i32>} : memref<1x8x256xf32, #tpu.memory_space<vmem>>, vector<1x8x256xf32>,
    return
  }
  func.func @transform_0(%arg0: i32) -> (i32, i32, i32) {
    %c0_i32 = arith.constant 0 : i32
    %c0_i32_0 = arith.constant 0 : i32
    %c0_i32_1 = arith.constant 0 : i32
    return %arg0, %c0_i32, %c0_i32_0 : i32, i32, i32
  }
  func.func @transform_1(%arg0: i32) -> (i32, i32) {
    %c0_i32 = arith.constant 0 : i32
    %c0_i32_0 = arith.constant 0 : i32
    %c0_i32_1 = arith.constant 0 : i32
    return %c0_i32, %c0_i32_0 : i32, i32
  }
  func.func @transform_2(%arg0: i32) -> (i32, i32) {
    %c0_i32 = arith.constant 0 : i32
    %c0_i32_0 = arith.constant 0 : i32
    %c0_i32_1 = arith.constant 0 : i32
    return %c0_i32, %c0_i32_0 : i32, i32
  }
  func.func @transform_3(%arg0: i32) -> (i32, i32) {
    %c0_i32 = arith.constant 0 : i32
    %c0_i32_0 = arith.constant 0 : i32
    %c0_i32_1 = arith.constant 0 : i32
    return %c0_i32, %c0_i32_0 : i32, i32
  }
  func.func @transform_4(%arg0: i32) -> (i32, i32, i32) {
    %c0_i32 = arith.constant 0 : i32
    %c0_i32_0 = arith.constant 0 : i32
    %c0_i32_1 = arith.constant 0 : i32
    return %arg0, %c0_i32, %c0_i32_0 : i32, i32, i32
  }
}

</mosaic_0001>

<llo_original>
// kernel: rc_forward.1
$region0: #{rc_forward.1}
  #allocation0 [shape = 'u32[]', space=smem, size = 0x4, offset = 0x4, fixed_abs, tag = 'smem constant byte address 0x4 - core index']
  #allocation1 [shape = 'u32[72,128]{1,0:T(1,128)}', space=vmem, size = 0x9000, scoped, tag = 'internal scratch']
  %s0 = inlined_call_operand.vmem [shape: f32[2,4,256], index: 0, kind: input, shape index: {}]
  %s1 = inlined_call_operand.vmem [shape: f32[72,4], index: 1, kind: input, shape index: {}]
  %s2 = inlined_call_operand.vmem [shape: f32[8,1], index: 2, kind: input, shape index: {}]
  %s3 = inlined_call_operand.vmem [shape: f32[4,256], index: 3, kind: input, shape index: {}]
  %s4 = inlined_call_operand.vmem [shape: f32[2,8,256], index: 4, kind: output, shape index: {}]
  %s5 = sld [smem:[#allocation0]]
  $region49: #{rc_forward.1} parent=0
    _
  %s7 = ssub.s32 1, %s5
  %s8 = scalar_select 0, %s7, %s5
  loop: start=0, step=1, limit=4
  $region2: #{rc_forward.1} parent=0 // loop_pre_header
    _
  $region3: #{rc_forward.1} parent=0 // loop_header
    %s10 = sphi 0, %s14
    %p11 = scmp.ge.s32.totalorder %s10, 4
    %s20 = sphi 0, %s22
    %s23 = sphi 0, %s20
    %s24 = sphi 0, %s23
    %s40 = sphi 0, %s24
    %s44 = sphi 0, %s44
    %s46 = sphi 0, %s44
    %s47 = sphi 0, %s46
    %s61 = sphi 0, %s47
    %s65 = sphi 0, %s65
    %s67 = sphi 0, %s65
    %s68 = sphi 0, %s67
    %s82 = sphi 0, %s68
    %s86 = sphi 0, %s86
    %s88 = sphi 0, %s86
    %s89 = sphi 0, %s88
    %s103 = sphi 0, %s89
    %s109 = sphi 0, %s111
    %s112 = sphi 0, %s109
    %s113 = sphi 0, %s112
    %s129 = sphi 0, %s113
  $region4: #{rc_forward.1} parent=0 // loop_header_branch
    %13 = sbr.rel (%p11) target = $region8
  $region5: #{rc_forward.1} parent=0 // loop_body
    %s15 = ssub.s32 %s10, 1
    %s16 = ssub.s32 %s10, 2
    %s17 = sadd.s32 %s10, 1
    %s18 = ssub.s32 %s10, %s17
    %p19 = scmp.eq.s32.totalorder %s18, 0
    %s21 = sadd.s32 %s20, 1
    %s22 = scalar_select %p19, %s20, %s21
    %p25 = pneg %p19
    %p26 = scmp.eq.s32.totalorder %s10, 1
    %p27 = por %p25, %p26
    %p28 = scmp.ne.s32.totalorder %s20, %s23
    %p29 = scmp.eq.s32.totalorder %s10, 0
    %p30 = por %p28, %p29
    %p31 = scmp.ne.s32.totalorder %s20, %s23
    %p32 = scmp.eq.s32.totalorder %s15, 1
    %p33 = por %p31, %p32
    %p34 = scmp.ne.s32.totalorder %s23, %s24
    %p35 = scmp.eq.s32.totalorder %s15, 0
    %p36 = por %p34, %p35
    %p37 = scmp.ne.s32.totalorder %s23, %s24
    %p38 = scmp.eq.s32.totalorder %s16, 1
    %p39 = por %p37, %p38
    %p41 = scmp.ne.s32.totalorder %s24, %s40
    %p42 = scmp.eq.s32.totalorder %s16, 0
    %p43 = por %p41, %p42
    %s45 = sadd.s32 %s44, 1
    %p48 = scmp.eq.s32.totalorder %s10, 1
    %p49 = scmp.ne.s32.totalorder %s44, %s46
    %p50 = scmp.eq.s32.totalorder %s10, 0
    %p51 = por %p49, %p50
    %p52 = scmp.ne.s32.totalorder %s44, %s46
    %p53 = scmp.eq.s32.totalorder %s15, 1
    %p54 = por %p52, %p53
    %p55 = scmp.ne.s32.totalorder %s46, %s47
    %p56 = scmp.eq.s32.totalorder %s15, 0
    %p57 = por %p55, %p56
    %p58 = scmp.ne.s32.totalorder %s46, %s47
    %p59 = scmp.eq.s32.totalorder %s16, 1
    %p60 = por %p58, %p59
    %p62 = scmp.ne.s32.totalorder %s47, %s61
    %p63 = scmp.eq.s32.totalorder %s16, 0
    %p64 = por %p62, %p63
    %s66 = sadd.s32 %s65, 1
    %p69 = scmp.eq.s32.totalorder %s10, 1
    %p70 = scmp.ne.s32.totalorder %s65, %s67
    %p71 = scmp.eq.s32.totalorder %s10, 0
    %p72 = por %p70, %p71
    %p73 = scmp.ne.s32.totalorder %s65, %s67
    %p74 = scmp.eq.s32.totalorder %s15, 1
    %p75 = por %p73, %p74
    %p76 = scmp.ne.s32.totalorder %s67, %s68
    %p77 = scmp.eq.s32.totalorder %s15, 0
    %p78 = por %p76, %p77
    %p79 = scmp.ne.s32.totalorder %s67, %s68
    %p80 = scmp.eq.s32.totalorder %s16, 1
    %p81 = por %p79, %p80
    %p83 = scmp.ne.s32.totalorder %s68, %s82
    %p84 = scmp.eq.s32.totalorder %s16, 0
    %p85 = por %p83, %p84
    %s87 = sadd.s32 %s86, 1
    %p90 = scmp.eq.s32.totalorder %s10, 1
    %p91 = scmp.ne.s32.totalorder %s86, %s88
    %p92 = scmp.eq.s32.totalorder %s10, 0
    %p93 = por %p91, %p92
    %p94 = scmp.ne.s32.totalorder %s86, %s88
    %p95 = scmp.eq.s32.totalorder %s15, 1
    %p96 = por %p94, %p95
    %p97 = scmp.ne.s32.totalorder %s88, %s89
    %p98 = scmp.eq.s32.totalorder %s15, 0
    %p99 = por %p97, %p98
    %p100 = scmp.ne.s32.totalorder %s88, %s89
    %p101 = scmp.eq.s32.totalorder %s16, 1
    %p102 = por %p100, %p101
    %p104 = scmp.ne.s32.totalorder %s89, %s103
    %p105 = scmp.eq.s32.totalorder %s16, 0
    %p106 = por %p104, %p105
    %s107 = ssub.s32 %s10, %s17
    %p108 = scmp.eq.s32.totalorder %s107, 0
    %s110 = sadd.s32 %s109, 1
    %s111 = scalar_select %p108, %s109, %s110
    %p114 = pneg %p108
    %p115 = scmp.eq.s32.totalorder %s10, 1
    %p116 = por %p114, %p115
    %p117 = scmp.ne.s32.totalorder %s109, %s112
    %p118 = scmp.eq.s32.totalorder %s10, 0
    %p119 = por %p117, %p118
    %p120 = scmp.ne.s32.totalorder %s109, %s112
    %p121 = scmp.eq.s32.totalorder %s15, 1
    %p122 = por %p120, %p121
    %p123 = scmp.ne.s32.totalorder %s112, %s113
    %p124 = scmp.eq.s32.totalorder %s15, 0
    %p125 = por %p123, %p124
    %p126 = scmp.ne.s32.totalorder %s112, %s113
    %p127 = scmp.eq.s32.totalorder %s16, 1
    %p128 = por %p126, %p127
    %p130 = scmp.ne.s32.totalorder %s113, %s129
    %p131 = scmp.eq.s32.totalorder %s16, 0
    %p132 = por %p130, %p131
    %p133 = scmp.le.s32.totalorder 1, %s10
    %p134 = scmp.lt.s32.totalorder %s10, 3
    %p135 = pnand %p133, %p134
    %p136 = pneg %p135
    // Predicated region
    $region9: #{rc_forward.1} parent=5 // pred_check
      _
    $region10: #{rc_forward.1} parent=5 // pred_check_branch
      %138 = sbr.rel (%p135) target = $region12
    $region11: #{rc_forward.1} parent=5 // pred_region
      %s139 = ssub.s32 %s10, 1
      // Predicated region
      $region13: #{rc_forward.1} parent=11 // pred_check
        %p140 = pneg %p57
      $region14: #{rc_forward.1} parent=11 // pred_check_branch
        %142 = sbr.rel (%p140) target = $region16
      $region15: #{rc_forward.1} parent=11 // pred_region
        _
      $region16: #{rc_forward.1} parent=11 // pred_fallthru
        _
      // Predicated region
      $region17: #{rc_forward.1} parent=11 // pred_check
        %p143 = pneg %p78
      $region18: #{rc_forward.1} parent=11 // pred_check_branch
        %145 = sbr.rel (%p143) target = $region20
      $region19: #{rc_forward.1} parent=11 // pred_region
        _
      $region20: #{rc_forward.1} parent=11 // pred_fallthru
        _
      // Predicated region
      $region21: #{rc_forward.1} parent=11 // pred_check
        %p146 = pneg %p99
      $region22: #{rc_forward.1} parent=11 // pred_check_branch
        %148 = sbr.rel (%p146) target = $region24
      $region23: #{rc_forward.1} parent=11 // pred_region
        _
      $region24: #{rc_forward.1} parent=11 // pred_fallthru
        _
    $region12: #{rc_forward.1} parent=5 // pred_fallthru
      _
    %p149 = scmp.lt.s32.totalorder %s10, 2
    // Predicated region
    $region25: #{rc_forward.1} parent=5 // pred_check
      %p150 = pneg %p149
    $region26: #{rc_forward.1} parent=5 // pred_check_branch
      %152 = sbr.rel (%p150) target = $region28
    $region27: #{rc_forward.1} parent=5 // pred_region
      // Predicated region
      $region29: #{rc_forward.1} parent=27 // pred_check
        %p153 = pneg %p30
      $region30: #{rc_forward.1} parent=27 // pred_check_branch
        %155 = sbr.rel (%p153) target = $region32
      $region31: #{rc_forward.1} parent=27 // pred_region
        %p156 = scmp.lt.s32.totalorder %s10, 1
        %s157 = scalar_select %p156, %s10, 1
        %s158 = smul.addr %s157, 2
        %s159 = smul.addr %s158, 4
        %s160 = scalar_lea.vmem %s0, %s159
      $region32: #{rc_forward.1} parent=27 // pred_fallthru
        _
    $region28: #{rc_forward.1} parent=5 // pred_fallthru
      _
    %p161 = scmp.le.s32.totalorder 1, %s10
    %p162 = scmp.lt.s32.totalorder %s10, 3
    %p163 = pnand %p161, %p162
    %p164 = pneg %p163
    // Predicated region
    $region33: #{rc_forward.1} parent=5 // pred_check
      _
    $region34: #{rc_forward.1} parent=5 // pred_check_branch
      %166 = sbr.rel (%p163) target = $region36
    $region35: #{rc_forward.1} parent=5 // pred_region
      %s167 = ssub.s32 %s10, 1
      %p168 = scmp.lt.s32.totalorder %s15, 1
      %s169 = scalar_select %p168, %s15, 1
      %s170 = smul.addr %s169, 2
      %s171 = smul.addr %s170, 4
      %s172 = scalar_lea.vmem %s0, %s171
      %p173 = pneg %p36
      %p174 = pneg %p33
      %p175 = pneg %p57
      %p176 = pneg %p54
      %p177 = pneg %p78
      %p178 = pneg %p75
      %p179 = pneg %p99
      %p180 = pneg %p96
      %p181 = pneg %p125
      %p182 = pneg %p122
      %p183 = scmp.lt.s32.totalorder %s15, 1
      %s184 = scalar_select %p183, %s15, 1
      %s185 = smul.addr %s184, 2
      %s186 = smul.addr %s185, 8
      %s187 = scalar_lea.vmem %s4, %s186
      %p188 = scmp.lt.s32.totalorder %s15, 1
      %s189 = scalar_select %p188, %s15, 1
      %s190 = smul.addr %s189, 2
      %s191 = smul.addr %s190, 4
      %s192 = scalar_lea.vmem %s0, %s191
      %p193 = scmp.lt.s32.totalorder %s15, 1
      %s194 = scalar_select %p193, %s15, 1
      %s195 = smul.addr %s194, 2
      %s196 = smul.addr %s195, 8
      %s197 = scalar_lea.vmem %s4, %s196
      %v198 = vld [vmem:[%s192] sm:$0xff]
      %v199 = vld [vmem:[%s1] sm:$0xff]
      %v200 = vld [vmem:[%s1 + $0x8] sm:$0xff]
      %v201 = vld [vmem:[%s1 + $0x10] sm:$0xff]
      %v202 = vld [vmem:[%s1 + $0x18] sm:$0xff]
      %v203 = vld [vmem:[%s1 + $0x20] sm:$0xff]
      %v204 = vld [vmem:[%s1 + $0x28] sm:$0xff]
      %v205 = vld [vmem:[%s1 + $0x30] sm:$0xff]
      %v206 = vld [vmem:[%s1 + $0x38] sm:$0xff]
      %v207 = vld [vmem:[%s1 + $0x40] sm:$0xff]
      %209 = vset.pattern.permute.xlu0 0
      %210 = vperm.xlu0 %209, %v199
      %v211 = vpop.permute.xlu0 %210
      %214 = vset.pattern.permute.xlu0 0
      %215 = vperm.xlu0 %214, %v200
      %v216 = vpop.permute.xlu0 %215
      %219 = vset.pattern.permute.xlu0 0
      %220 = vperm.xlu0 %219, %v201
      %v221 = vpop.permute.xlu0 %220
      %224 = vset.pattern.permute.xlu0 0
      %225 = vperm.xlu0 %224, %v202
      %v226 = vpop.permute.xlu0 %225
      %229 = vset.pattern.permute.xlu0 0
      %230 = vperm.xlu0 %229, %v203
      %v231 = vpop.permute.xlu0 %230
      %234 = vset.pattern.permute.xlu0 0
      %235 = vperm.xlu0 %234, %v204
      %v236 = vpop.permute.xlu0 %235
      %239 = vset.pattern.permute.xlu0 0
      %240 = vperm.xlu0 %239, %v205
      %v241 = vpop.permute.xlu0 %240
      %244 = vset.pattern.permute.xlu0 0
      %245 = vperm.xlu0 %244, %v206
      %v246 = vpop.permute.xlu0 %245
      %249 = vset.pattern.permute.xlu0 0
      %250 = vperm.xlu0 %249, %v207
      %v251 = vpop.permute.xlu0 %250
      %v254 = vperm.slane %v198, 0
      %v255 = vperm.slane %v198, 4
      %v258 = vperm.slane %v254, 0
      %v259 = vperm.slane %v255, 0
      %v260 = vmul.f32 %v211, %v258
      %v261 = vmul.f32 %v211, %v259
      %v262 = vmul.f32 %v216, %v258
      %v263 = vmul.f32 %v216, %v259
      %v264 = vmul.f32 %v221, %v258
      %v265 = vmul.f32 %v221, %v259
      %v266 = vmul.f32 %v226, %v258
      %v267 = vmul.f32 %v226, %v259
      %v268 = vmul.f32 %v231, %v258
      %v269 = vmul.f32 %v231, %v259
      %v270 = vmul.f32 %v236, %v258
      %v271 = vmul.f32 %v236, %v259
      %v272 = vmul.f32 %v241, %v258
      %v273 = vmul.f32 %v241, %v259
      %v274 = vmul.f32 %v246, %v258
      %v275 = vmul.f32 %v246, %v259
      %v276 = vmul.f32 %v251, %v258
      %v277 = vmul.f32 %v251, %v259
      %278 = vset.pattern.permute.xlu0 1
      %279 = vperm.xlu0 %278, %v199
      %v280 = vpop.permute.xlu0 %279
      %282 = vset.pattern.permute.xlu0 1
      %283 = vperm.xlu0 %282, %v200
      %v284 = vpop.permute.xlu0 %283
      %286 = vset.pattern.permute.xlu0 1
      %287 = vperm.xlu0 %286, %v201
      %v288 = vpop.permute.xlu0 %287
      %290 = vset.pattern.permute.xlu0 1
      %291 = vperm.xlu0 %290, %v202
      %v292 = vpop.permute.xlu0 %291
      %294 = vset.pattern.permute.xlu0 1
      %295 = vperm.xlu0 %294, %v203
      %v296 = vpop.permute.xlu0 %295
      %298 = vset.pattern.permute.xlu0 1
      %299 = vperm.xlu0 %298, %v204
      %v300 = vpop.permute.xlu0 %299
      %302 = vset.pattern.permute.xlu0 1
      %303 = vperm.xlu0 %302, %v205
      %v304 = vpop.permute.xlu0 %303
      %306 = vset.pattern.permute.xlu0 1
      %307 = vperm.xlu0 %306, %v206
      %v308 = vpop.permute.xlu0 %307
      %310 = vset.pattern.permute.xlu0 1
      %311 = vperm.xlu0 %310, %v207
      %v312 = vpop.permute.xlu0 %311
      %v314 = vperm.slane %v198, 1
      %v315 = vperm.slane %v198, 5
      %v318 = vperm.slane %v314, 1
      %v319 = vperm.slane %v315, 1
      %v320 = vmul.f32 %v280, %v318
      %v321 = vmul.f32 %v280, %v319
      %v322 = vmul.f32 %v284, %v318
      %v323 = vmul.f32 %v284, %v319
      %v324 = vmul.f32 %v288, %v318
      %v325 = vmul.f32 %v288, %v319
      %v326 = vmul.f32 %v292, %v318
      %v327 = vmul.f32 %v292, %v319
      %v328 = vmul.f32 %v296, %v318
      %v329 = vmul.f32 %v296, %v319
      %v330 = vmul.f32 %v300, %v318
      %v331 = vmul.f32 %v300, %v319
      %v332 = vmul.f32 %v304, %v318
      %v333 = vmul.f32 %v304, %v319
      %v334 = vmul.f32 %v308, %v318
      %v335 = vmul.f32 %v308, %v319
      %v336 = vmul.f32 %v312, %v318
      %v337 = vmul.f32 %v312, %v319
      %v338 = vadd.f32 %v260, %v320
      %v339 = vadd.f32 %v261, %v321
      %v340 = vadd.f32 %v262, %v322
      %v341 = vadd.f32 %v263, %v323
      %v342 = vadd.f32 %v264, %v324
      %v343 = vadd.f32 %v265, %v325
      %v344 = vadd.f32 %v266, %v326
      %v345 = vadd.f32 %v267, %v327
      %v346 = vadd.f32 %v268, %v328
      %v347 = vadd.f32 %v269, %v329
      %v348 = vadd.f32 %v270, %v330
      %v349 = vadd.f32 %v271, %v331
      %v350 = vadd.f32 %v272, %v332
      %v351 = vadd.f32 %v273, %v333
      %v352 = vadd.f32 %v274, %v334
      %v353 = vadd.f32 %v275, %v335
      %v354 = vadd.f32 %v276, %v336
      %v355 = vadd.f32 %v277, %v337
      %356 = vset.pattern.permute.xlu0 2
      %357 = vperm.xlu0 %356, %v199
      %v358 = vpop.permute.xlu0 %357
      %360 = vset.pattern.permute.xlu0 2
      %361 = vperm.xlu0 %360, %v200
      %v362 = vpop.permute.xlu0 %361
      %364 = vset.pattern.permute.xlu0 2
      %365 = vperm.xlu0 %364, %v201
      %v366 = vpop.permute.xlu0 %365
      %368 = vset.pattern.permute.xlu0 2
      %369 = vperm.xlu0 %368, %v202
      %v370 = vpop.permute.xlu0 %369
      %372 = vset.pattern.permute.xlu0 2
      %373 = vperm.xlu0 %372, %v203
      %v374 = vpop.permute.xlu0 %373
      %376 = vset.pattern.permute.xlu0 2
      %377 = vperm.xlu0 %376, %v204
      %v378 = vpop.permute.xlu0 %377
      %380 = vset.pattern.permute.xlu0 2
      %381 = vperm.xlu0 %380, %v205
      %v382 = vpop.permute.xlu0 %381
      %384 = vset.pattern.permute.xlu0 2
      %385 = vperm.xlu0 %384, %v206
      %v386 = vpop.permute.xlu0 %385
      %388 = vset.pattern.permute.xlu0 2
      %389 = vperm.xlu0 %388, %v207
      %v390 = vpop.permute.xlu0 %389
      %v392 = vperm.slane %v198, 2
      %v393 = vperm.slane %v198, 6
      %v396 = vperm.slane %v392, 2
      %v397 = vperm.slane %v393, 2
      %v398 = vmul.f32 %v358, %v396
      %v399 = vmul.f32 %v358, %v397
      %v400 = vmul.f32 %v362, %v396
      %v401 = vmul.f32 %v362, %v397
      %v402 = vmul.f32 %v366, %v396
      %v403 = vmul.f32 %v366, %v397
      %v404 = vmul.f32 %v370, %v396
      %v405 = vmul.f32 %v370, %v397
      %v406 = vmul.f32 %v374, %v396
      %v407 = vmul.f32 %v374, %v397
      %v408 = vmul.f32 %v378, %v396
      %v409 = vmul.f32 %v378, %v397
      %v410 = vmul.f32 %v382, %v396
      %v411 = vmul.f32 %v382, %v397
      %v412 = vmul.f32 %v386, %v396
      %v413 = vmul.f32 %v386, %v397
      %v414 = vmul.f32 %v390, %v396
      %v415 = vmul.f32 %v390, %v397
      %v416 = vadd.f32 %v338, %v398
      %v417 = vadd.f32 %v339, %v399
      %v418 = vadd.f32 %v340, %v400
      %v419 = vadd.f32 %v341, %v401
      %v420 = vadd.f32 %v342, %v402
      %v421 = vadd.f32 %v343, %v403
      %v422 = vadd.f32 %v344, %v404
      %v423 = vadd.f32 %v345, %v405
      %v424 = vadd.f32 %v346, %v406
      %v425 = vadd.f32 %v347, %v407
      %v426 = vadd.f32 %v348, %v408
      %v427 = vadd.f32 %v349, %v409
      %v428 = vadd.f32 %v350, %v410
      %v429 = vadd.f32 %v351, %v411
      %v430 = vadd.f32 %v352, %v412
      %v431 = vadd.f32 %v353, %v413
      %v432 = vadd.f32 %v354, %v414
      %v433 = vadd.f32 %v355, %v415
      %434 = vset.pattern.permute.xlu0 3
      %435 = vperm.xlu0 %434, %v199
      %v436 = vpop.permute.xlu0 %435
      %438 = vset.pattern.permute.xlu0 3
      %439 = vperm.xlu0 %438, %v200
      %v440 = vpop.permute.xlu0 %439
      %442 = vset.pattern.permute.xlu0 3
      %443 = vperm.xlu0 %442, %v201
      %v444 = vpop.permute.xlu0 %443
      %446 = vset.pattern.permute.xlu0 3
      %447 = vperm.xlu0 %446, %v202
      %v448 = vpop.permute.xlu0 %447
      %450 = vset.pattern.permute.xlu0 3
      %451 = vperm.xlu0 %450, %v203
      %v452 = vpop.permute.xlu0 %451
      %454 = vset.pattern.permute.xlu0 3
      %455 = vperm.xlu0 %454, %v204
      %v456 = vpop.permute.xlu0 %455
      %458 = vset.pattern.permute.xlu0 3
      %459 = vperm.xlu0 %458, %v205
      %v460 = vpop.permute.xlu0 %459
      %462 = vset.pattern.permute.xlu0 3
      %463 = vperm.xlu0 %462, %v206
      %v464 = vpop.permute.xlu0 %463
      %466 = vset.pattern.permute.xlu0 3
      %467 = vperm.xlu0 %466, %v207
      %v468 = vpop.permute.xlu0 %467
      %v470 = vperm.slane %v198, 3
      %v471 = vperm.slane %v198, 7
      %v474 = vperm.slane %v470, 3
      %v475 = vperm.slane %v471, 3
      %v476 = vmul.f32 %v436, %v474
      %v477 = vmul.f32 %v436, %v475
      %v478 = vmul.f32 %v440, %v474
      %v479 = vmul.f32 %v440, %v475
      %v480 = vmul.f32 %v444, %v474
      %v481 = vmul.f32 %v444, %v475
      %v482 = vmul.f32 %v448, %v474
      %v483 = vmul.f32 %v448, %v475
      %v484 = vmul.f32 %v452, %v474
      %v485 = vmul.f32 %v452, %v475
      %v486 = vmul.f32 %v456, %v474
      %v487 = vmul.f32 %v456, %v475
      %v488 = vmul.f32 %v460, %v474
      %v489 = vmul.f32 %v460, %v475
      %v490 = vmul.f32 %v464, %v474
      %v491 = vmul.f32 %v464, %v475
      %v492 = vmul.f32 %v468, %v474
      %v493 = vmul.f32 %v468, %v475
      %v494 = vadd.f32 %v416, %v476
      %v495 = vadd.f32 %v417, %v477
      %v496 = vadd.f32 %v418, %v478
      %v497 = vadd.f32 %v419, %v479
      %v498 = vadd.f32 %v420, %v480
      %v499 = vadd.f32 %v421, %v481
      %v500 = vadd.f32 %v422, %v482
      %v501 = vadd.f32 %v423, %v483
      %v502 = vadd.f32 %v424, %v484
      %v503 = vadd.f32 %v425, %v485
      %v504 = vadd.f32 %v426, %v486
      %v505 = vadd.f32 %v427, %v487
      %v506 = vadd.f32 %v428, %v488
      %v507 = vadd.f32 %v429, %v489
      %v508 = vadd.f32 %v430, %v490
      %v509 = vadd.f32 %v431, %v491
      %v510 = vadd.f32 %v432, %v492
      %v511 = vadd.f32 %v433, %v493
      %v512 = vld [vmem:[%s3] sm:$0xff]
      %vm513 = vcmp.gt.f32.partialorder %v512, 0.5
      %514 = vrot.lane.b32.xlu0 %v494, 1
      %v515 = vpop.permute.xlu0 %514
      %516 = vrot.lane.b32.xlu0 %v495, 1
      %v517 = vpop.permute.xlu0 %516
      %v518 = vlaneseq
      %v519 = vand.u32 %v518, 127
      %vm520 = vcmp.lt.s32.totalorder %v519, 1
      %v521 = vsel %vm520, %v515, %v517
      %v522 = vsel %vm520, %v517, %v515
      %523 = vrot.lane.b32.xlu0 %v494, 127
      %v524 = vpop.permute.xlu0 %523
      %525 = vrot.lane.b32.xlu0 %v495, 127
      %v526 = vpop.permute.xlu0 %525
      %vm527 = vcmp.lt.s32.totalorder %v519, 127
      %v528 = vsel %vm527, %v524, %v526
      %v529 = vsel %vm527, %v526, %v524
      %v530 = vsel %vm513, 1, 0
      %v531 = vperm.slane %v530, 2
      %v532 = vperm.slane %v530, 6
      %v533 = vperm.slane %v531, 2
      %v534 = vperm.slane %v532, 2
      %vm535 = vcmp.eq.s32.totalorder %v533, 1
      %vm536 = vcmp.eq.s32.totalorder %v534, 1
      %v537 = vsel %vm535, %v528, %v522
      %v538 = vsel %vm536, %v529, %v521
      %539 = vrot.lane.b32.xlu0 %v537, 16
      %v540 = vpop.permute.xlu0 %539
      %541 = vrot.lane.b32.xlu0 %v538, 16
      %v542 = vpop.permute.xlu0 %541
      %vm543 = vcmp.lt.s32.totalorder %v519, 16
      %v544 = vsel %vm543, %v540, %v542
      %v545 = vsel %vm543, %v542, %v540
      %546 = vrot.lane.b32.xlu0 %v537, 112
      %v547 = vpop.permute.xlu0 %546
      %548 = vrot.lane.b32.xlu0 %v538, 112
      %v549 = vpop.permute.xlu0 %548
      %vm550 = vcmp.lt.s32.totalorder %v519, 112
      %v551 = vsel %vm550, %v547, %v549
      %v552 = vsel %vm550, %v549, %v547
      %v553 = vperm.slane %v530, 0
      %v554 = vperm.slane %v530, 4
      %v555 = vperm.slane %v553, 0
      %v556 = vperm.slane %v554, 0
      %vm557 = vcmp.eq.s32.totalorder %v555, 1
      %vm558 = vcmp.eq.s32.totalorder %v556, 1
      %v559 = vsel %vm557, %v551, %v545
      %v560 = vsel %vm558, %v552, %v544
      %v561 = vadd.f32 %v559, 0.0
      %v562 = vadd.f32 %v560, 0.0
      %563 = vrot.lane.b32.xlu0 %v496, 16
      %v564 = vpop.permute.xlu0 %563
      %565 = vrot.lane.b32.xlu0 %v497, 16
      %v566 = vpop.permute.xlu0 %565
      %v567 = vsel %vm543, %v564, %v566
      %v568 = vsel %vm543, %v566, %v564
      %569 = vrot.lane.b32.xlu0 %v496, 112
      %v570 = vpop.permute.xlu0 %569
      %571 = vrot.lane.b32.xlu0 %v497, 112
      %v572 = vpop.permute.xlu0 %571
      %v573 = vsel %vm550, %v570, %v572
      %v574 = vsel %vm550, %v572, %v570
      %v575 = vsel %vm557, %v573, %v568
      %v576 = vsel %vm558, %v574, %v567
      %v577 = vadd.f32 %v561, %v575
      %v578 = vadd.f32 %v562, %v576
      %579 = vrot.lane.b32.xlu0 %v498, 127
      %v580 = vpop.permute.xlu0 %579
      %581 = vrot.lane.b32.xlu0 %v499, 127
      %v582 = vpop.permute.xlu0 %581
      %v583 = vsel %vm527, %v580, %v582
      %v584 = vsel %vm527, %v582, %v580
      %585 = vrot.lane.b32.xlu0 %v498, 1
      %v586 = vpop.permute.xlu0 %585
      %587 = vrot.lane.b32.xlu0 %v499, 1
      %v588 = vpop.permute.xlu0 %587
      %v589 = vsel %vm520, %v586, %v588
      %v590 = vsel %vm520, %v588, %v586
      %v591 = vperm.slane %v530, 3
      %v592 = vperm.slane %v530, 7
      %v593 = vperm.slane %v591, 3
      %v594 = vperm.slane %v592, 3
      %vm595 = vcmp.eq.s32.totalorder %v593, 1
      %vm596 = vcmp.eq.s32.totalorder %v594, 1
      %v597 = vsel %vm595, %v590, %v583
      %v598 = vsel %vm596, %v589, %v584
      %599 = vrot.lane.b32.xlu0 %v597, 16
      %v600 = vpop.permute.xlu0 %599
      %601 = vrot.lane.b32.xlu0 %v598, 16
      %v602 = vpop.permute.xlu0 %601
      %v603 = vsel %vm543, %v600, %v602
      %v604 = vsel %vm543, %v602, %v600
      %605 = vrot.lane.b32.xlu0 %v597, 112
      %v606 = vpop.permute.xlu0 %605
      %607 = vrot.lane.b32.xlu0 %v598, 112
      %v608 = vpop.permute.xlu0 %607
      %v609 = vsel %vm550, %v606, %v608
      %v610 = vsel %vm550, %v608, %v606
      %v611 = vsel %vm557, %v609, %v604
      %v612 = vsel %vm558, %v610, %v603
      %v613 = vadd.f32 %v577, %v611
      %v614 = vadd.f32 %v578, %v612
      %615 = vrot.lane.b32.xlu0 %v500, 1
      %v616 = vpop.permute.xlu0 %615
      %617 = vrot.lane.b32.xlu0 %v501, 1
      %v618 = vpop.permute.xlu0 %617
      %v619 = vsel %vm520, %v616, %v618
      %v620 = vsel %vm520, %v618, %v616
      %621 = vrot.lane.b32.xlu0 %v500, 127
      %v622 = vpop.permute.xlu0 %621
      %623 = vrot.lane.b32.xlu0 %v501, 127
      %v624 = vpop.permute.xlu0 %623
      %v625 = vsel %vm527, %v622, %v624
      %v626 = vsel %vm527, %v624, %v622
      %v627 = vsel %vm535, %v625, %v620
      %v628 = vsel %vm536, %v626, %v619
      %v629 = vadd.f32 %v613, %v627
      %v630 = vadd.f32 %v614, %v628
      %v631 = vadd.f32 %v629, %v502
      %v632 = vadd.f32 %v630, %v503
      %633 = vrot.lane.b32.xlu0 %v504, 127
      %v634 = vpop.permute.xlu0 %633
      %635 = vrot.lane.b32.xlu0 %v505, 127
      %v636 = vpop.permute.xlu0 %635
      %v637 = vsel %vm527, %v634, %v636
      %v638 = vsel %vm527, %v636, %v634
      %639 = vrot.lane.b32.xlu0 %v504, 1
      %v640 = vpop.permute.xlu0 %639
      %641 = vrot.lane.b32.xlu0 %v505, 1
      %v642 = vpop.permute.xlu0 %641
      %v643 = vsel %vm520, %v640, %v642
      %v644 = vsel %vm520, %v642, %v640
      %v645 = vsel %vm595, %v644, %v637
      %v646 = vsel %vm596, %v643, %v638
      %v647 = vadd.f32 %v631, %v645
      %v648 = vadd.f32 %v632, %v646
      %649 = vrot.lane.b32.xlu0 %v506, 1
      %v650 = vpop.permute.xlu0 %649
      %651 = vrot.lane.b32.xlu0 %v507, 1
      %v652 = vpop.permute.xlu0 %651
      %v653 = vsel %vm520, %v650, %v652
      %v654 = vsel %vm520, %v652, %v650
      %655 = vrot.lane.b32.xlu0 %v506, 127
      %v656 = vpop.permute.xlu0 %655
      %657 = vrot.lane.b32.xlu0 %v507, 127
      %v658 = vpop.permute.xlu0 %657
      %v659 = vsel %vm527, %v656, %v658
      %v660 = vsel %vm527, %v658, %v656
      %v661 = vsel %vm535, %v659, %v654
      %v662 = vsel %vm536, %v660, %v653
      %663 = vrot.lane.b32.xlu0 %v661, 112
      %v664 = vpop.permute.xlu0 %663
      %665 = vrot.lane.b32.xlu0 %v662, 112
      %v666 = vpop.permute.xlu0 %665
      %v667 = vsel %vm550, %v664, %v666
      %v668 = vsel %vm550, %v666, %v664
      %669 = vrot.lane.b32.xlu0 %v661, 16
      %v670 = vpop.permute.xlu0 %669
      %671 = vrot.lane.b32.xlu0 %v662, 16
      %v672 = vpop.permute.xlu0 %671
      %v673 = vsel %vm543, %v670, %v672
      %v674 = vsel %vm543, %v672, %v670
      %v675 = vperm.slane %v530, 1
      %v676 = vperm.slane %v530, 5
      %v677 = vperm.slane %v675, 1
      %v678 = vperm.slane %v676, 1
      %vm679 = vcmp.eq.s32.totalorder %v677, 1
      %vm680 = vcmp.eq.s32.totalorder %v678, 1
      %v681 = vsel %vm679, %v674, %v667
      %v682 = vsel %vm680, %v673, %v668
      %v683 = vadd.f32 %v647, %v681
      %v684 = vadd.f32 %v648, %v682
      %685 = vrot.lane.b32.xlu0 %v508, 112
      %v686 = vpop.permute.xlu0 %685
      %687 = vrot.lane.b32.xlu0 %v509, 112
      %v688 = vpop.permute.xlu0 %687
      %v689 = vsel %vm550, %v686, %v688
      %v690 = vsel %vm550, %v688, %v686
      %691 = vrot.lane.b32.xlu0 %v508, 16
      %v692 = vpop.permute.xlu0 %691
      %693 = vrot.lane.b32.xlu0 %v509, 16
      %v694 = vpop.permute.xlu0 %693
      %v695 = vsel %vm543, %v692, %v694
      %v696 = vsel %vm543, %v694, %v692
      %v697 = vsel %vm679, %v696, %v689
      %v698 = vsel %vm680, %v695, %v690
      %v699 = vadd.f32 %v683, %v697
      %v700 = vadd.f32 %v684, %v698
      %701 = vrot.lane.b32.xlu0 %v510, 127
      %v702 = vpop.permute.xlu0 %701
      %703 = vrot.lane.b32.xlu0 %v511, 127
      %v704 = vpop.permute.xlu0 %703
      %v705 = vsel %vm527, %v702, %v704
      %v706 = vsel %vm527, %v704, %v702
      %707 = vrot.lane.b32.xlu0 %v510, 1
      %v708 = vpop.permute.xlu0 %707
      %709 = vrot.lane.b32.xlu0 %v511, 1
      %v710 = vpop.permute.xlu0 %709
      %v711 = vsel %vm520, %v708, %v710
      %v712 = vsel %vm520, %v710, %v708
      %v713 = vsel %vm595, %v712, %v705
      %v714 = vsel %vm596, %v711, %v706
      %715 = vrot.lane.b32.xlu0 %v713, 112
      %v716 = vpop.permute.xlu0 %715
      %717 = vrot.lane.b32.xlu0 %v714, 112
      %v718 = vpop.permute.xlu0 %717
      %v719 = vsel %vm550, %v716, %v718
      %v720 = vsel %vm550, %v718, %v716
      %721 = vrot.lane.b32.xlu0 %v713, 16
      %v722 = vpop.permute.xlu0 %721
      %723 = vrot.lane.b32.xlu0 %v714, 16
      %v724 = vpop.permute.xlu0 %723
      %v725 = vsel %vm543, %v722, %v724
      %v726 = vsel %vm543, %v724, %v722
      %v727 = vsel %vm679, %v726, %v719
      %v728 = vsel %vm680, %v725, %v720
      %v729 = vadd.f32 %v699, %v727
      %v730 = vadd.f32 %v700, %v728
      %v731 = vld [vmem:[%s2] sm:$0xff]
      %733 = vset.pattern.permute.xlu0 0
      %734 = vperm.xlu0 %733, %v731
      %v735 = vpop.permute.xlu0 %734
      %v737 = vadd.f32 %v729, %v735
      %v738 = vadd.f32 %v730, %v735
      %v739 = vmax.f32 %v737, 0.0
      %v740 = vmax.f32 %v738, 0.0
      %741 = vst [vmem:[%s197] sm:$0xff] %v739
      %742 = vst [vmem:[%s197 + $0x8] sm:$0xff] %v740
      %p743 = scmp.lt.s32.totalorder %s15, 1
      %s744 = scalar_select %p743, %s15, 1
      %s745 = smul.addr %s744, 2
      %s746 = smul.addr %s745, 8
      %s747 = scalar_lea.vmem %s4, %s746
      // Predicated region
      $region37: #{rc_forward.1} parent=35 // pred_check
        %p748 = pneg %p122
      $region38: #{rc_forward.1} parent=35 // pred_check_branch
        %750 = sbr.rel (%p748) target = $region40
      $region39: #{rc_forward.1} parent=35 // pred_region
        _
      $region40: #{rc_forward.1} parent=35 // pred_fallthru
        _
    $region36: #{rc_forward.1} parent=5 // pred_fallthru
      _
    %p751 = scmp.le.s32.totalorder 2, %s10
    // Predicated region
    $region41: #{rc_forward.1} parent=5 // pred_check
      %p752 = pneg %p751
    $region42: #{rc_forward.1} parent=5 // pred_check_branch
      %754 = sbr.rel (%p752) target = $region44
    $region43: #{rc_forward.1} parent=5 // pred_region
      %s755 = ssub.s32 %s10, 2
      // Predicated region
      $region45: #{rc_forward.1} parent=43 // pred_check
        %p756 = pneg %p128
      $region46: #{rc_forward.1} parent=43 // pred_check_branch
        %758 = sbr.rel (%p756) target = $region48
      $region47: #{rc_forward.1} parent=43 // pred_region
        %p759 = scmp.lt.s32.totalorder %s16, 1
        %s760 = scalar_select %p759, %s16, 1
        %s761 = smul.addr %s760, 2
        %s762 = smul.addr %s761, 8
        %s763 = scalar_lea.vmem %s4, %s762
      $region48: #{rc_forward.1} parent=43 // pred_fallthru
        _
    $region44: #{rc_forward.1} parent=5 // pred_fallthru
      _
  $region6: #{rc_forward.1} parent=0 // loop_footer
    %s14 = sadd.s32 1, %s10
  $region7: #{rc_forward.1} parent=0 // loop_footer_branch
    %9 = sbr.rel target = $region3
  $region8: #{rc_forward.1} parent=0 // loop_exit
    _

</llo_original>
